<compile_context>
chip_gen: v5e
topology: v5e:2x2
jax: 0.10.0
libtpu: 0.0.40
codegen_flags: <defaults>
</compile_context>

<pallas_src>
import functools
import math

import jax
import jax.numpy as jnp
from jax import lax
from jax.experimental import pallas as pl
from jax.experimental.pallas import tpu as pltpu

BETA = 0.3
GAMMA = 0.4
# clip(1/(1+0.3*d^2), 0.4, 1.0) with the diagonal zeroed is exactly this band:
_BIAS_D0 = 0.0
_BIAS_D1 = 1.0 / (1.0 + BETA * 1.0)    # 0.7692308
_BIAS_D2 = 1.0 / (1.0 + BETA * 4.0)    # 0.4545455
_BIAS_FAR = GAMMA                       # |d| >= 3 clips to gamma


def _tc_flash_kernel(qi_ref, ki_ref, klast_ref,           # scalar-prefetch (SMEM)
                     q_ref, k_ref, v_ref, o_ref,           # tiles (VMEM)
                     m_sc, l_sc, acc_sc, q_sc,              # scratch (VMEM)
                     *, tq, tk, scale, kv_resident):
    """One (batch, flattened lower-triangular step) of flash attention with the
    truncated-Cauchy band bias and causal mask fused into the score pass."""
    step = pl.program_id(1)
    qi = qi_ref[step]          # q-tile index for this step
    ki = ki_ref[step]          # kv-tile index for this step
    k_last = klast_ref[step]   # last kv-tile needed by this q tile

    q_start = qi * tq
    k_start = ki * tk

    # --- per-q-tile init: softmax state + scaled/cast q (hoisted out of kv loop) ---
    @pl.when(ki == 0)
    def _init():
        m_sc[...] = jnp.full_like(m_sc, -jnp.inf)
        l_sc[...] = jnp.zeros_like(l_sc)
        acc_sc[...] = jnp.zeros_like(acc_sc)
        q_sc[...] = (q_ref[0].astype(jnp.float32)
                     * jnp.float32(scale)).astype(q_sc.dtype)

    # --- fetch the kv chunk for this step ---
    if kv_resident:
        off = pl.multiple_of(k_start, tk)
        k = k_ref[0, pl.ds(off, tk), :]                      # (tk, D)
        v = v_ref[0, pl.ds(off, tk), :]                      # (tk, D)
    else:
        k = k_ref[0]                                          # (tk, D)
        v = v_ref[0]                                          # (tk, D)

    q = q_sc[...]                                             # (tq, D), pre-scaled

    # QK^T: contract the shared feature axis directly (no k transpose), f32 acc.
    s = lax.dot_general(q, k, (((1,), (1,)), ((), ())),
                        preferred_element_type=jnp.float32)   # (tq, tk)

    def online_update(s_biased):
        m_prev = m_sc[...]                                            # (tq, 1)
        m_new = jnp.maximum(m_prev, jnp.max(s_biased, axis=-1, keepdims=True))
        alpha = jnp.exp(m_prev - m_new)
        p = jnp.exp(s_biased - m_new)                                 # (tq, tk)
        l_sc[...] = alpha * l_sc[...] + jnp.sum(p, axis=-1, keepdims=True)
        acc_sc[...] = alpha * acc_sc[...] + jnp.dot(
            p.astype(v.dtype), v, preferred_element_type=jnp.float32)
        m_sc[...] = m_new

    # Interior tiles: every element has delta >= 3 -> bias is the constant GAMMA and
    # no causal masking is needed.  Only diagonal-crossing tiles pay the where-chain.
    interior = (k_start + (tk - 1)) <= (q_start - 3)

    @pl.when(interior)
    def _interior():
        online_update(s + jnp.float32(_BIAS_FAR))

    @pl.when(jnp.logical_not(interior))
    def _band():
        rows = q_start + lax.broadcasted_iota(jnp.int32, (tq, tk), 0)
        cols = k_start + lax.broadcasted_iota(jnp.int32, (tq, tk), 1)
        delta = rows - cols       # < 0 => future token (masked); >= 0 => band bias
        bias = jnp.where(
            delta < 0, jnp.float32(-jnp.inf),
            jnp.where(delta == 0, jnp.float32(_BIAS_D0),
                      jnp.where(delta == 1, jnp.float32(_BIAS_D1),
                                jnp.where(delta == 2, jnp.float32(_BIAS_D2),
                                          jnp.float32(_BIAS_FAR)))))
        online_update(s + bias)

    # Epilogue: runs once per q tile -> exact reciprocal (divide) is essentially free
    # and restores ~1e-5 accuracy on the f32 path.
    @pl.when(ki == k_last)
    def _finalize():
        o_ref[0] = (acc_sc[...] / l_sc[...]).astype(o_ref.dtype)


def _pick_tile(length, target):
    """Largest tile <= target that divides `length` and is a multiple of 8
    (sublane constraint); falls back to the full length."""
    if length <= target:
        return length
    t = (target // 8) * 8
    while t >= 8:
        if length % t == 0:
            return t
        t -= 8
    # TODO(synk): prime-ish L with no multiple-of-8 divisor falls back to a full-L
    # block — correct, but pad L upstream for very long sequences to avoid VMEM blowup.
    return length


def truncated_cauchy_attention(query, key, value, *, q_tile=512, k_tile=256,
                               compute_dtype=jnp.bfloat16, kv_resident=None):
    """query/key/value: (B, L, D) -> (B, L, D). Flash-style tiled attention.

    q_tile=512 keeps the kv stream MXU-bound even on v5e's ~0.8 TB/s HBM.
    compute_dtype=bf16 (default) runs both matmuls on bf16 MXU operands with f32
    accumulation; pass compute_dtype=None for an exact f32 path.
    kv_resident=None auto-enables per-batch K/V VMEM residency when it fits a
    v7x-safe budget (64 MiB physical VMEM).
    """
    B, L, D = query.shape
    out_dtype = query.dtype
    tq = _pick_tile(L, q_tile)
    tk = _pick_tile(L, k_tile)
    nq = L // tq
    scale = 1.0 / math.sqrt(L)

    if compute_dtype is not None:
        # Cast outside the kernel so K/V tile DMAs are halved (they are the dominant
        # HBM traffic term); softmax state stays f32 inside the kernel.
        query = query.astype(compute_dtype)
        key = key.astype(compute_dtype)
        value = value.astype(compute_dtype)
    in_item = jnp.dtype(query.dtype).itemsize
    qsc_dtype = compute_dtype if compute_dtype is not None else jnp.float32

    # Flattened lower-triangular (qi, ki) enumeration: no grid steps are wasted on
    # fully-masked (above-diagonal) tiles.  Scalar-prefetch arrays feed the index_maps
    # and the kernel's init/finalize conditions.
    qi_list, ki_list, klast_list = [], [], []
    for qi in range(nq):
        k_last = (qi * tq + tq - 1) // tk
        for ki in range(k_last + 1):
            qi_list.append(qi)
            ki_list.append(ki)
            klast_list.append(k_last)
    steps = len(qi_list)
    qi_ids = jnp.asarray(qi_list, jnp.int32)
    ki_ids = jnp.asarray(ki_list, jnp.int32)
    klast_ids = jnp.asarray(klast_list, jnp.int32)

    # K/V residency: one fetch per batch instead of nq fetches, when it fits a budget
    # that is safe even on v7x (64 MiB physical VMEM, 32 MiB default scoped limit).
    kv_resident_bytes = 2 * 2 * L * D * in_item          # K and V, double-buffered
    if kv_resident is None:
        kv_resident = kv_resident_bytes <= (16 << 20)

    q_spec = pl.BlockSpec((1, tq, D), lambda b, s, qi, ki, kl: (b, qi[s], 0))
    out_spec = pl.BlockSpec((1, tq, D), lambda b, s, qi, ki, kl: (b, qi[s], 0))
    if kv_resident:
        kv_spec = pl.BlockSpec((1, L, D), lambda b, s, qi, ki, kl: (b, 0, 0))
        kv_buf_bytes = kv_resident_bytes
    else:
        kv_spec = pl.BlockSpec((1, tk, D), lambda b, s, qi, ki, kl: (b, ki[s], 0))
        kv_buf_bytes = 2 * 2 * tk * D * in_item

    # Re-derived VMEM budget (double-buffered I/O + scratch), clamped so v7x keeps
    # >=16 MiB of its 64 MiB physical VMEM as headroom.
    vmem_est = (2 * tq * D * in_item                                   # q (2 bufs)
                + kv_buf_bytes                                         # k + v
                + 2 * tq * D * jnp.dtype(out_dtype).itemsize           # out (2 bufs)
                + 2 * (tq * 4)                                         # m, l
                + tq * D * 4                                           # acc
                + tq * D * jnp.dtype(qsc_dtype).itemsize)              # scaled q
    vmem_limit = min(max(int(vmem_est * 1.5) + (2 << 20), 32 << 20), 48 << 20)

    kernel = functools.partial(_tc_flash_kernel, tq=tq, tk=tk, scale=scale,
                               kv_resident=kv_resident)

    # TODO(synk): on v7x with B == 1 the batch ("parallel") axis cannot balance the
    # two TensorCores; interleaving q tiles across cores would need an explicit
    # core_map split of the flattened step axis.
    return pl.pallas_call(
        kernel,
        out_shape=jax.ShapeDtypeStruct((B, L, D), out_dtype),
        grid_spec=pltpu.PrefetchScalarGridSpec(
            num_scalar_prefetch=3,
            grid=(B, steps),
            in_specs=[q_spec, kv_spec, kv_spec],
            out_specs=out_spec,
            scratch_shapes=[
                pltpu.VMEM((tq, 1), jnp.float32),   # running row max m
                pltpu.VMEM((tq, 1), jnp.float32),   # running denom l
                pltpu.VMEM((tq, D), jnp.float32),   # unnormalized output acc
                pltpu.VMEM((tq, D), qsc_dtype),     # pre-scaled / pre-cast q
            ],
        ),
        compiler_params=pltpu.CompilerParams(
            dimension_semantics=("parallel", "arbitrary"),
            vmem_limit_bytes=vmem_limit,
        ),
    )(qi_ids, ki_ids, klast_ids, query, key, value)


def init_params(key, d_model, q, v, h):
    """Deterministic init of the module's Linear parameters (shapes from __init__).

    These projections are dead code in the reference forward (they do not feed the
    returned attention), but we mirror them faithfully."""
    ks = jax.random.split(key, 8)

    def lin(kw, kb, out_dim, in_dim):
        bound = 1.0 / math.sqrt(in_dim)
        w = jax.random.uniform(kw, (out_dim, in_dim), jnp.float32, -bound, bound)
        b = jax.random.uniform(kb, (out_dim,), jnp.float32, -bound, bound)
        return w, b

    return {
        "W_q": lin(ks[0], ks[1], q * h, d_model),
        "W_k": lin(ks[2], ks[3], q * h, d_model),
        "W_v": lin(ks[4], ks[5], v * h, d_model),
        "W_o": lin(ks[6], ks[7], d_model, h * v),
    }


@functools.partial(jax.jit, static_argnames=("h",))
def forward(params, query, key, value, h):
    """Mirrors Truncated_Cauchy_self_attention_layer.forward (mask=None).

    The dropout module and W_* projections exist in the PyTorch module but never
    affect the returned attention tensor; under jit XLA dead-code-eliminates them.
    The hot path runs in the Pallas kernel."""
    wq, bq = params["W_q"]
    wk, bk = params["W_k"]
    wv, bv = params["W_v"]
    _queries = jnp.concatenate(jnp.split(query @ wq.T + bq, h, axis=-1), axis=0)
    _keys = jnp.concatenate(jnp.split(key @ wk.T + bk, h, axis=-1), axis=0)
    _values = jnp.concatenate(jnp.split(value @ wv.T + bv, h, axis=-1), axis=0)
    return truncated_cauchy_attention(query, key, value)


def _reference(query, key, value):
    """Pure-JAX reference of the attention math for a sanity check."""
    B, L, D = query.shape
    s = jnp.einsum("bld,bmd->blm", query, key) / jnp.sqrt(jnp.float32(L))
    i = jnp.arange(L)
    dist = jnp.abs(i[:, None] - i[None, :]).astype(jnp.float32)
    cauchy = jnp.clip(1.0 / (1.0 + BETA * dist**2), GAMMA, 1.0)
    cauchy = cauchy * (1.0 - jnp.eye(L, dtype=jnp.float32))
    s = s + cauchy[None]
    s = jnp.where((i[None, :] > i[:, None])[None], -jnp.inf, s)
    p = jax.nn.softmax(s, axis=-1)
    return jnp.einsum("blm,bmd->bld", p, value)


def _bf16_ref(q, k, v):
    f32 = jnp.float32
    b = jnp.bfloat16
    return _reference(q.astype(b).astype(f32), k.astype(b).astype(f32),
                      v.astype(b).astype(f32))


if __name__ == "__main__":
    # --- Test 1: exact f32 path, single-tile, module-scale shapes ------------
    B, L, d_model = 2, 8, 32
    q_dim, v_dim, h = 8, 8, 4

    root = jax.random.PRNGKey(0)
    k_params, kq, kk, kv = jax.random.split(root, 4)

    params = init_params(k_params, d_model, q_dim, v_dim, h)
    query = jax.random.normal(kq, (B, L, d_model), jnp.float32)
    key = jax.random.normal(kk, (B, L, d_model), jnp.float32)
    value = jax.random.normal(kv, (B, L, d_model), jnp.float32)

    ref = _reference(query, key, value)
    out_f32 = jax.block_until_ready(
        truncated_cauchy_attention(query, key, value, compute_dtype=None))
    assert out_f32.shape == (B, L, d_model)
    assert jnp.allclose(out_f32, ref, atol=1e-5, rtol=1e-5), "f32 mismatch (small)"

    # --- Test 2: module forward (bf16 MXU operands by default) ---------------
    out_fwd = jax.block_until_ready(forward(params, query, key, value, h=h))
    assert out_fwd.shape == (B, L, d_model)
    assert jnp.allclose(out_fwd, _bf16_ref(query, key, value),
                        atol=3e-2, rtol=3e-2), "bf16 forward mismatch (small)"

    # --- Test 3: multi-tile flattened grid + interior/band split + resident K/V (f32)
    B2, L2, D2 = 1, 256, 128
    kq2, kk2, kv2 = jax.random.split(jax.random.PRNGKey(1), 3)
    q2 = jax.random.normal(kq2, (B2, L2, D2), jnp.float32)
    k2 = jax.random.normal(kk2, (B2, L2, D2), jnp.float32)
    v2 = jax.random.normal(kv2, (B2, L2, D2), jnp.float32)
    ref2 = _reference(q2, k2, v2)
    out2 = jax.block_until_ready(
        truncated_cauchy_attention(q2, k2, v2, q_tile=128, k_tile=64,
                                   compute_dtype=None))
    assert jnp.allclose(out2, ref2, atol=1e-4, rtol=1e-4), "f32 mismatch (tiled)"

    # --- Test 4: streamed-K/V path + bf16 compute -----------------------------
    out3 = jax.block_until_ready(
        truncated_cauchy_attention(q2, k2, v2, q_tile=128, k_tile=64,
                                   kv_resident=False))
    assert jnp.allclose(out3, _bf16_ref(q2, k2, v2),
                        atol=3e-2, rtol=3e-2), "bf16 mismatch (tiled, streamed)"

    print("KERNEL_OK")
</pallas_src>

<mosaic_0001>
module attributes {stable_mosaic.version = 11 : i64} {
  func.func @_tc_flash_kernel(%arg0: i32, %arg1: i32, %arg2: memref<1xi32, #tpu.memory_space<smem>>, %arg3: memref<1xi32, #tpu.memory_space<smem>>, %arg4: memref<1xi32, #tpu.memory_space<smem>>, %arg5: memref<1x8x32xf32, #tpu.memory_space<vmem>>, %arg6: memref<1x8x32xf32, #tpu.memory_space<vmem>>, %arg7: memref<1x8x32xf32, #tpu.memory_space<vmem>>, %arg8: memref<1x8x32xf32, #tpu.memory_space<vmem>>, %arg9: memref<8x1xf32, #tpu.memory_space<vmem>>, %arg10: memref<8x1xf32, #tpu.memory_space<vmem>>, %arg11: memref<8x32xf32, #tpu.memory_space<vmem>>, %arg12: memref<8x32xf32, #tpu.memory_space<vmem>>) attributes {dimension_semantics = [#tpu.dimension_semantics<parallel>, #tpu.dimension_semantics<arbitrary>], iteration_bounds = array<i64: 2, 1>, scalar_prefetch = 3 : i64, scratch_operands = 4 : i64, tpu.core_type = #tpu.core_type<tc>, window_params = [{transform_indices = @transform_0, window_bounds = array<i64: 1, 8, 32>}, {transform_indices = @transform_1, window_bounds = array<i64: 1, 8, 32>}, {transform_indices = @transform_2, window_bounds = array<i64: 1, 8, 32>}, {transform_indices = @transform_3, window_bounds = array<i64: 1, 8, 32>}]} {
    %0 = arith.index_cast %arg1 : i32 to index
    %1 = memref.load %arg2[%0] : memref<1xi32, #tpu.memory_space<smem>>
    %2 = arith.index_cast %arg1 : i32 to index
    %3 = memref.load %arg3[%2] : memref<1xi32, #tpu.memory_space<smem>>
    %4 = arith.index_cast %arg1 : i32 to index
    %5 = memref.load %arg4[%4] : memref<1xi32, #tpu.memory_space<smem>>
    %c8_i32 = arith.constant 8 : i32
    %6 = arith.muli %1, %c8_i32 : i32
    %c8_i32_0 = arith.constant 8 : i32
    %7 = arith.muli %3, %c8_i32_0 : i32
    %c0_i32 = arith.constant 0 : i32
    %8 = arith.cmpi eq, %3, %c0_i32 : i32
    %9 = arith.extui %8 : i1 to i32
    %c0_i32_1 = arith.constant 0 : i32
    %10 = arith.cmpi ne, %9, %c0_i32_1 : i32
    scf.if %10 {
      %cst_10 = arith.constant 0xFF800000 : f32
      %31 = vector.broadcast %cst_10 : f32 to vector<8x1xf32>
      %c0_11 = arith.constant 0 : index
      %c0_12 = arith.constant 0 : index
      %32 = vector.load %arg9[%c0_11, %c0_12] : memref<8x1xf32, #tpu.memory_space<vmem>>, vector<8x1xf32>
      tpu.vector_store %arg9[%c0_11, %c0_12], %31 {strides = array<i32>} : memref<8x1xf32, #tpu.memory_space<vmem>>, vector<8x1xf32>,
      %cst_13 = arith.constant 0.000000e+00 : f32
      %33 = vector.broadcast %cst_13 : f32 to vector<8x1xf32>
      %c0_14 = arith.constant 0 : index
      %c0_15 = arith.constant 0 : index
      %34 = vector.load %arg10[%c0_14, %c0_15] : memref<8x1xf32, #tpu.memory_space<vmem>>, vector<8x1xf32>
      tpu.vector_store %arg10[%c0_14, %c0_15], %33 {strides = array<i32>} : memref<8x1xf32, #tpu.memory_space<vmem>>, vector<8x1xf32>,
      %cst_16 = arith.constant 0.000000e+00 : f32
      %35 = vector.broadcast %cst_16 : f32 to vector<8x32xf32>
      %c0_17 = arith.constant 0 : index
      %c0_18 = arith.constant 0 : index
      %36 = vector.load %arg11[%c0_17, %c0_18] : memref<8x32xf32, #tpu.memory_space<vmem>>, vector<8x32xf32>
      tpu.vector_store %arg11[%c0_17, %c0_18], %35 {strides = array<i32>} : memref<8x32xf32, #tpu.memory_space<vmem>>, vector<8x32xf32>,
      %c0_19 = arith.constant 0 : index
      %c0_20 = arith.constant 0 : index
      %c0_21 = arith.constant 0 : index
      %37 = vector.load %arg5[%c0_19, %c0_20, %c0_21] : memref<1x8x32xf32, #tpu.memory_space<vmem>>, vector<1x8x32xf32>
      %38 = vector.shape_cast %37 : vector<1x8x32xf32> to vector<8x32xf32>
      %cst_22 = arith.constant 0.353553385 : f32
      %39 = vector.broadcast %cst_22 : f32 to vector<8x32xf32>
      %40 = arith.mulf %38, %39 : vector<8x32xf32>
      %c0_23 = arith.constant 0 : index
      %c0_24 = arith.constant 0 : index
      %41 = vector.load %arg12[%c0_23, %c0_24] : memref<8x32xf32, #tpu.memory_space<vmem>>, vector<8x32xf32>
      tpu.vector_store %arg12[%c0_23, %c0_24], %40 {strides = array<i32>} : memref<8x32xf32, #tpu.memory_space<vmem>>, vector<8x32xf32>,
    } else {
    }
    %11 = tpu.assume_multiple %7, 8 : i32
    %c0 = arith.constant 0 : index
    %12 = arith.index_cast %11 : i32 to index
    %c0_2 = arith.constant 0 : index
    %13 = vector.load %arg6[%c0, %12, %c0_2] : memref<1x8x32xf32, #tpu.memory_space<vmem>>, vector<1x8x32xf32>
    %14 = vector.shape_cast %13 : vector<1x8x32xf32> to vector<8x32xf32>
    %c0_3 = arith.constant 0 : index
    %15 = arith.index_cast %11 : i32 to index
    %c0_4 = arith.constant 0 : index
    %16 = vector.load %arg7[%c0_3, %15, %c0_4] : memref<1x8x32xf32, #tpu.memory_space<vmem>>, vector<1x8x32xf32>
    %17 = vector.shape_cast %16 : vector<1x8x32xf32> to vector<8x32xf32>
    %c0_5 = arith.constant 0 : index
    %c0_6 = arith.constant 0 : index
    %18 = vector.load %arg12[%c0_5, %c0_6] : memref<8x32xf32, #tpu.memory_space<vmem>>, vector<8x32xf32>
    %cst = arith.constant dense<0.000000e+00> : vector<8x8xf32>
    %19 = tpu.matmul %18, %14, %cst {dimension_numbers = #tpu.dot_dimension_numbers<[1], [1], [0], [0], [0, 0, 1, 0], [], []>} : vector<8x32xf32>, vector<8x32xf32>, vector<8x8xf32> -> vector<8x8xf32>
    %c7_i32 = arith.constant 7 : i32
    %20 = arith.addi %7, %c7_i32 : i32
    %c3_i32 = arith.constant 3 : i32
    %21 = arith.subi %6, %c3_i32 : i32
    %22 = arith.cmpi sle, %20, %21 : i32
    %23 = arith.extui %22 : i1 to i32
    %c0_i32_7 = arith.constant 0 : i32
    %24 = arith.cmpi ne, %23, %c0_i32_7 : i32
    scf.if %24 {
      %cst_10 = arith.constant 4.000000e-01 : f32
      %31 = vector.broadcast %cst_10 : f32 to vector<8x8xf32>
      %32 = arith.addf %19, %31 : vector<8x8xf32>
      %c0_11 = arith.constant 0 : index
      %c0_12 = arith.constant 0 : index
      %33 = vector.load %arg9[%c0_11, %c0_12] : memref<8x1xf32, #tpu.memory_space<vmem>>, vector<8x1xf32>
      %cst_13 = arith.constant dense<0xFF800000> : vector<8xf32>
      %34 = vector.multi_reduction <maximumf>, %32, %cst_13 [1] : vector<8x8xf32> to vector<8xf32>
      %35 = vector.shape_cast %34 : vector<8xf32> to vector<8x1xf32>
      %36 = arith.maximumf %33, %35 : vector<8x1xf32>
      %37 = arith.subf %33, %36 : vector<8x1xf32>
      %38 = math.exp %37 : vector<8x1xf32>
      %39 = vector.broadcast %36 : vector<8x1xf32> to vector<8x8xf32>
      %40 = arith.subf %32, %39 : vector<8x8xf32>
      %41 = math.exp %40 : vector<8x8xf32>
      %c0_14 = arith.constant 0 : index
      %c0_15 = arith.constant 0 : index
      %42 = vector.load %arg10[%c0_14, %c0_15] : memref<8x1xf32, #tpu.memory_space<vmem>>, vector<8x1xf32>
      %43 = arith.mulf %38, %42 : vector<8x1xf32>
      %cst_16 = arith.constant dense<0.000000e+00> : vector<8xf32>
      %44 = vector.multi_reduction <add>, %41, %cst_16 [1] : vector<8x8xf32> to vector<8xf32>
      %45 = vector.shape_cast %44 : vector<8xf32> to vector<8x1xf32>
      %46 = arith.addf %43, %45 : vector<8x1xf32>
      %c0_17 = arith.constant 0 : index
      %c0_18 = arith.constant 0 : index
      %47 = vector.load %arg10[%c0_17, %c0_18] : memref<8x1xf32, #tpu.memory_space<vmem>>, vector<8x1xf32>
      tpu.vector_store %arg10[%c0_17, %c0_18], %46 {strides = array<i32>} : memref<8x1xf32, #tpu.memory_space<vmem>>, vector<8x1xf32>,
      %c0_19 = arith.constant 0 : index
      %c0_20 = arith.constant 0 : index
      %48 = vector.load %arg11[%c0_19, %c0_20] : memref<8x32xf32, #tpu.memory_space<vmem>>, vector<8x32xf32>
      %49 = vector.broadcast %38 : vector<8x1xf32> to vector<8x32xf32>
      %50 = arith.mulf %49, %48 : vector<8x32xf32>
      %cst_21 = arith.constant dense<0.000000e+00> : vector<8x32xf32>
      %51 = tpu.matmul %41, %17, %cst_21 {dimension_numbers = #tpu.dot_dimension_numbers<[1], [0], [0], [1], [0, 0, 1, 1], [], []>} : vector<8x8xf32>, vector<8x32xf32>, vector<8x32xf32> -> vector<8x32xf32>
      %52 = arith.addf %50, %51 : vector<8x32xf32>
      %c0_22 = arith.constant 0 : index
      %c0_23 = arith.constant 0 : index
      %53 = vector.load %arg11[%c0_22, %c0_23] : memref<8x32xf32, #tpu.memory_space<vmem>>, vector<8x32xf32>
      tpu.vector_store %arg11[%c0_22, %c0_23], %52 {strides = array<i32>} : memref<8x32xf32, #tpu.memory_space<vmem>>, vector<8x32xf32>,
      %c0_24 = arith.constant 0 : index
      %c0_25 = arith.constant 0 : index
      %54 = vector.load %arg9[%c0_24, %c0_25] : memref<8x1xf32, #tpu.memory_space<vmem>>, vector<8x1xf32>
      tpu.vector_store %arg9[%c0_24, %c0_25], %36 {strides = array<i32>} : memref<8x1xf32, #tpu.memory_space<vmem>>, vector<8x1xf32>,
    } else {
    }
    %true = arith.constant true
    %25 = arith.xori %22, %true : i1
    %26 = arith.extui %25 : i1 to i32
    %c0_i32_8 = arith.constant 0 : i32
    %27 = arith.cmpi ne, %26, %c0_i32_8 : i32
    scf.if %27 {
      %31 = tpu.iota {dimensions = array<i32: 0>} : vector<8x8xi32>
      %32 = vector.broadcast %6 : i32 to vector<8x8xi32>
      %33 = arith.addi %32, %31 : vector<8x8xi32>
      %34 = tpu.iota {dimensions = array<i32: 1>} : vector<8x8xi32>
      %35 = vector.broadcast %7 : i32 to vector<8x8xi32>
      %36 = arith.addi %35, %34 : vector<8x8xi32>
      %37 = arith.subi %33, %36 : vector<8x8xi32>
      %c0_i32_10 = arith.constant 0 : i32
      %38 = vector.broadcast %c0_i32_10 : i32 to vector<8x8xi32>
      %39 = arith.cmpi slt, %37, %38 : vector<8x8xi32>
      %c0_i32_11 = arith.constant 0 : i32
      %40 = vector.broadcast %c0_i32_11 : i32 to vector<8x8xi32>
      %41 = arith.cmpi eq, %37, %40 : vector<8x8xi32>
      %c1_i32 = arith.constant 1 : i32
      %42 = vector.broadcast %c1_i32 : i32 to vector<8x8xi32>
      %43 = arith.cmpi eq, %37, %42 : vector<8x8xi32>
      %c2_i32 = arith.constant 2 : i32
      %44 = vector.broadcast %c2_i32 : i32 to vector<8x8xi32>
      %45 = arith.cmpi eq, %37, %44 : vector<8x8xi32>
      %cst_12 = arith.constant 0.454545468 : f32
      %cst_13 = arith.constant 4.000000e-01 : f32
      %46 = vector.broadcast %cst_12 : f32 to vector<8x8xf32>
      %47 = vector.broadcast %cst_13 : f32 to vector<8x8xf32>
      %48 = arith.select %45, %46, %47 : vector<8x8xi1>, vector<8x8xf32>
      %cst_14 = arith.constant 0.769230782 : f32
      %49 = vector.broadcast %cst_14 : f32 to vector<8x8xf32>
      %50 = arith.select %43, %49, %48 : vector<8x8xi1>, vector<8x8xf32>
      %cst_15 = arith.constant 0.000000e+00 : f32
      %51 = vector.broadcast %cst_15 : f32 to vector<8x8xf32>
      %52 = arith.select %41, %51, %50 : vector<8x8xi1>, vector<8x8xf32>
      %cst_16 = arith.constant 0xFF800000 : f32
      %53 = vector.broadcast %cst_16 : f32 to vector<8x8xf32>
      %54 = arith.select %39, %53, %52 : vector<8x8xi1>, vector<8x8xf32>
      %55 = arith.addf %19, %54 : vector<8x8xf32>
      %c0_17 = arith.constant 0 : index
      %c0_18 = arith.constant 0 : index
      %56 = vector.load %arg9[%c0_17, %c0_18] : memref<8x1xf32, #tpu.memory_space<vmem>>, vector<8x1xf32>
      %cst_19 = arith.constant dense<0xFF800000> : vector<8xf32>
      %57 = vector.multi_reduction <maximumf>, %55, %cst_19 [1] : vector<8x8xf32> to vector<8xf32>
      %58 = vector.shape_cast %57 : vector<8xf32> to vector<8x1xf32>
      %59 = arith.maximumf %56, %58 : vector<8x1xf32>
      %60 = arith.subf %56, %59 : vector<8x1xf32>
      %61 = math.exp %60 : vector<8x1xf32>
      %62 = vector.broadcast %59 : vector<8x1xf32> to vector<8x8xf32>
      %63 = arith.subf %55, %62 : vector<8x8xf32>
      %64 = math.exp %63 : vector<8x8xf32>
      %c0_20 = arith.constant 0 : index
      %c0_21 = arith.constant 0 : index
      %65 = vector.load %arg10[%c0_20, %c0_21] : memref<8x1xf32, #tpu.memory_space<vmem>>, vector<8x1xf32>
      %66 = arith.mulf %61, %65 : vector<8x1xf32>
      %cst_22 = arith.constant dense<0.000000e+00> : vector<8xf32>
      %67 = vector.multi_reduction <add>, %64, %cst_22 [1] : vector<8x8xf32> to vector<8xf32>
      %68 = vector.shape_cast %67 : vector<8xf32> to vector<8x1xf32>
      %69 = arith.addf %66, %68 : vector<8x1xf32>
      %c0_23 = arith.constant 0 : index
      %c0_24 = arith.constant 0 : index
      %70 = vector.load %arg10[%c0_23, %c0_24] : memref<8x1xf32, #tpu.memory_space<vmem>>, vector<8x1xf32>
      tpu.vector_store %arg10[%c0_23, %c0_24], %69 {strides = array<i32>} : memref<8x1xf32, #tpu.memory_space<vmem>>, vector<8x1xf32>,
      %c0_25 = arith.constant 0 : index
      %c0_26 = arith.constant 0 : index
      %71 = vector.load %arg11[%c0_25, %c0_26] : memref<8x32xf32, #tpu.memory_space<vmem>>, vector<8x32xf32>
      %72 = vector.broadcast %61 : vector<8x1xf32> to vector<8x32xf32>
      %73 = arith.mulf %72, %71 : vector<8x32xf32>
      %cst_27 = arith.constant dense<0.000000e+00> : vector<8x32xf32>
      %74 = tpu.matmul %64, %17, %cst_27 {dimension_numbers = #tpu.dot_dimension_numbers<[1], [0], [0], [1], [0, 0, 1, 1], [], []>} : vector<8x8xf32>, vector<8x32xf32>, vector<8x32xf32> -> vector<8x32xf32>
      %75 = arith.addf %73, %74 : vector<8x32xf32>
      %c0_28 = arith.constant 0 : index
      %c0_29 = arith.constant 0 : index
      %76 = vector.load %arg11[%c0_28, %c0_29] : memref<8x32xf32, #tpu.memory_space<vmem>>, vector<8x32xf32>
      tpu.vector_store %arg11[%c0_28, %c0_29], %75 {strides = array<i32>} : memref<8x32xf32, #tpu.memory_space<vmem>>, vector<8x32xf32>,
      %c0_30 = arith.constant 0 : index
      %c0_31 = arith.constant 0 : index
      %77 = vector.load %arg9[%c0_30, %c0_31] : memref<8x1xf32, #tpu.memory_space<vmem>>, vector<8x1xf32>
      tpu.vector_store %arg9[%c0_30, %c0_31], %59 {strides = array<i32>} : memref<8x1xf32, #tpu.memory_space<vmem>>, vector<8x1xf32>,
    } else {
    }
    %28 = arith.cmpi eq, %3, %5 : i32
    %29 = arith.extui %28 : i1 to i32
    %c0_i32_9 = arith.constant 0 : i32
    %30 = arith.cmpi ne, %29, %c0_i32_9 : i32
    scf.if %30 {
      %c0_10 = arith.constant 0 : index
      %c0_11 = arith.constant 0 : index
      %31 = vector.load %arg11[%c0_10, %c0_11] : memref<8x32xf32, #tpu.memory_space<vmem>>, vector<8x32xf32>
      %c0_12 = arith.constant 0 : index
      %c0_13 = arith.constant 0 : index
      %32 = vector.load %arg10[%c0_12, %c0_13] : memref<8x1xf32, #tpu.memory_space<vmem>>, vector<8x1xf32>
      %33 = vector.broadcast %32 : vector<8x1xf32> to vector<8x32xf32>
      %34 = arith.divf %31, %33 : vector<8x32xf32>
      %c0_14 = arith.constant 0 : index
      %c0_15 = arith.constant 0 : index
      %c0_16 = arith.constant 0 : index
      %35 = vector.load %arg8[%c0_14, %c0_15, %c0_16] : memref<1x8x32xf32, #tpu.memory_space<vmem>>, vector<1x8x32xf32>
      %36 = vector.shape_cast %35 : vector<1x8x32xf32> to vector<8x32xf32>
      %37 = vector.shape_cast %34 : vector<8x32xf32> to vector<1x8x32xf32>
      tpu.vector_store %arg8[%c0_14, %c0_15, %c0_16], %37 {strides = array<i32>} : memref<1x8x32xf32, #tpu.memory_space<vmem>>, vector<1x8x32xf32>,
    } else {
    }
    return
  }
  func.func @transform_0(%arg0: i32, %arg1: i32, %arg2: memref<1xi32, #tpu.memory_space<smem>>, %arg3: memref<1xi32, #tpu.memory_space<smem>>, %arg4: memref<1xi32, #tpu.memory_space<smem>>) -> (i32, i32, i32) {
    %0 = arith.index_cast %arg1 : i32 to index
    %1 = memref.load %arg2[%0] : memref<1xi32, #tpu.memory_space<smem>>
    %c0_i32 = arith.constant 0 : i32
    %c0_i32_0 = arith.constant 0 : i32
    return %arg0, %1, %c0_i32 : i32, i32, i32
  }
  func.func @transform_1(%arg0: i32, %arg1: i32, %arg2: memref<1xi32, #tpu.memory_space<smem>>, %arg3: memref<1xi32, #tpu.memory_space<smem>>, %arg4: memref<1xi32, #tpu.memory_space<smem>>) -> (i32, i32, i32) {
    %c0_i32 = arith.constant 0 : i32
    %c0_i32_0 = arith.constant 0 : i32
    %c0_i32_1 = arith.constant 0 : i32
    return %arg0, %c0_i32, %c0_i32_0 : i32, i32, i32
  }
  func.func @transform_2(%arg0: i32, %arg1: i32, %arg2: memref<1xi32, #tpu.memory_space<smem>>, %arg3: memref<1xi32, #tpu.memory_space<smem>>, %arg4: memref<1xi32, #tpu.memory_space<smem>>) -> (i32, i32, i32) {
    %c0_i32 = arith.constant 0 : i32
    %c0_i32_0 = arith.constant 0 : i32
    %c0_i32_1 = arith.constant 0 : i32
    return %arg0, %c0_i32, %c0_i32_0 : i32, i32, i32
  }
  func.func @transform_3(%arg0: i32, %arg1: i32, %arg2: memref<1xi32, #tpu.memory_space<smem>>, %arg3: memref<1xi32, #tpu.memory_space<smem>>, %arg4: memref<1xi32, #tpu.memory_space<smem>>) -> (i32, i32, i32) {
    %0 = arith.index_cast %arg1 : i32 to index
    %1 = memref.load %arg2[%0] : memref<1xi32, #tpu.memory_space<smem>>
    %c0_i32 = arith.constant 0 : i32
    %c0_i32_0 = arith.constant 0 : i32
    return %arg0, %1, %c0_i32 : i32, i32, i32
  }
}

</mosaic_0001>

<llo_original>
// kernel: tpu_custom_call.1
$region0: #{tpu_custom_call.1}
  #allocation0 [shape = 'u32[]', space=smem, size = 0x4, offset = 0x4, fixed_abs, tag = 'smem constant byte address 0x4 - core index']
  #allocation1 [shape = 'u32[72,128]{1,0:T(1,128)}', space=vmem, size = 0x9000, scoped, tag = 'internal scratch']
  #allocation2 [shape = 'f32[8,1]{1,0:T(8,128)}', space=vmem, size = 0x1000, scoped, tag = 'scratch operand']
  #allocation3 [shape = 'f32[8,1]{1,0:T(8,128)}', space=vmem, size = 0x1000, scoped, tag = 'scratch operand']
  #allocation4 [shape = 'f32[8,32]{1,0:T(8,128)}', space=vmem, size = 0x1000, scoped, tag = 'scratch operand']
  #allocation5 [shape = 'f32[8,32]{1,0:T(8,128)}', space=vmem, size = 0x1000, scoped, tag = 'scratch operand']
  #allocation6 [shape = 's32[1]{0}', space=sflag, size = 0x4, scoped, tag = 'scoped memory for tpu_custom_call.1']
  #allocation7 [shape = 's32[1]{0:T(128)S(6)}', space=smem, size = 0x200, scoped, tag = 'prefetched SMEM operand 0']
  #allocation8 [shape = 's32[1]{0:T(128)S(6)}', space=smem, size = 0x200, scoped, tag = 'prefetched SMEM operand 1']
  #allocation9 [shape = 's32[1]{0:T(128)S(6)}', space=smem, size = 0x200, scoped, tag = 'prefetched SMEM operand 2']
  %s0 = inlined_call_operand.<no memory space> [shape: s32[1], index: 0, kind: input, shape index: {}]
  %s1 = inlined_call_operand.<no memory space> [shape: s32[1], index: 1, kind: input, shape index: {}]
  %s2 = inlined_call_operand.<no memory space> [shape: s32[1], index: 2, kind: input, shape index: {}]
  %s3 = inlined_call_operand.hbm [shape: f32[2,8,32], index: 3, kind: input, shape index: {}]
  %s4 = inlined_call_operand.hbm [shape: f32[2,8,32], index: 4, kind: input, shape index: {}]
  %s5 = inlined_call_operand.hbm [shape: f32[2,8,32], index: 5, kind: input, shape index: {}]
  %s6 = inlined_call_operand.hbm [shape: f32[2,8,32], index: 6, kind: output, shape index: {}]
  %s7 = sld [smem:[#allocation0]]
  $region73: #{tpu_custom_call.1} parent=0
    _
  %s9 = ssub.s32 1, %s7
  %s10 = scalar_select 0, %s9, %s7
  %11 = sst [smem:[#allocation7]] %s0
  %12 = sst [smem:[#allocation8]] %s1
  %13 = sst [smem:[#allocation9]] %s2
  $region1: #{tpu_custom_call.1} parent=0
    #allocation10 [shape = 'u8[8192]{0}', space=vmem, size = 0x2000, scoped, tag = 'input window, operand 3']
    #allocation11 [shape = 's32[2]{0}', space=sflag, size = 0x8, scoped, tag = 'scoped memory for tpu_custom_call.1']
    #allocation12 [shape = 's32[2]{0}', space=sflag, size = 0x8, scoped, tag = 'scoped memory for tpu_custom_call.1']
    #allocation13 [shape = 'u8[8192]{0}', space=vmem, size = 0x2000, scoped, tag = 'input window, operand 4']
    #allocation14 [shape = 's32[2]{0}', space=sflag, size = 0x8, scoped, tag = 'scoped memory for tpu_custom_call.1']
    #allocation15 [shape = 'u8[8192]{0}', space=vmem, size = 0x2000, scoped, tag = 'input window, operand 5']
    #allocation16 [shape = 'u8[8192]{0}', space=vmem, size = 0x2000, scoped, tag = 'output window, operand 0']
    %14 = vsyncpa [#allocation11], 0
    %s15 = scalar_lea.sflag [#allocation11], 1
    %16 = vsyncpa %s15, 0
    %17 = vsyncpa [#allocation14], 0
    %s18 = scalar_lea.sflag [#allocation14], 1
    %19 = vsyncpa %s18, 0
    %20 = vsyncpa [#allocation12], 0
    %s21 = scalar_lea.sflag [#allocation12], 1
    %22 = vsyncpa %s21, 0
    loop: start=0, step=1, limit=4
    $region2: #{tpu_custom_call.1} parent=1 // loop_pre_header
      _
    $region3: #{tpu_custom_call.1} parent=1 // loop_header
      %s24 = sphi 0, %s28
      %p25 = scmp.ge.s32.totalorder %s24, 4
      %s31 = sphi 0, %s43
      %s32 = sphi 0, %s39
      %s33 = sphi 0, %s31
      %s34 = sphi 0, %s32
      %s35 = sphi 0, %s33
      %s36 = sphi 0, %s34
      %s50 = sphi 0, %s52
      %s53 = sphi 0, %s50
      %s54 = sphi 0, %s53
      %s70 = sphi 0, %s54
      %s76 = sphi 0, %s78
      %s79 = sphi 0, %s76
      %s80 = sphi 0, %s79
      %s96 = sphi 0, %s80
      %s102 = sphi 0, %s104
      %s105 = sphi 0, %s102
      %s106 = sphi 0, %s105
      %s122 = sphi 0, %s106
      %s132 = sphi 0, %s134
      %s135 = sphi 0, %s132
      %s136 = sphi 0, %s135
      %s152 = sphi 0, %s136
    $region4: #{tpu_custom_call.1} parent=1 // loop_header_branch
      %27 = sbr.rel (%p25) target = $region8
    $region5: #{tpu_custom_call.1} parent=1 // loop_body
      %s29 = ssub.s32 %s24, 1
      %s30 = ssub.s32 %s24, 2
      %s37 = sadd.s32 1, %s32
      %p38 = scmp.ge.s32.totalorder %s37, 1
      %s39 = scalar_select %p38, 0, %s37
      %s40 = sadd.s32 1, %s31
      %s41 = scalar_select %p38, %s40, %s31
      %p42 = scmp.ge.s32.totalorder %s41, 2
      %s43 = scalar_select %p42, 0, %s41
      %s44 = sld [smem:[#allocation7 + %s32]]
      %s45 = sld [smem:[#allocation7 + %s39]]
      %s46 = ssub.s32 %s31, %s43
      %s47 = ssub.s32 %s44, %s45
      %s48 = sor.u32 %s46, %s47
      %p49 = scmp.eq.s32.totalorder %s48, 0
      %s51 = sadd.s32 %s50, 1
      %s52 = scalar_select %p49, %s50, %s51
      %p55 = pneg %p49
      %p56 = scmp.eq.s32.totalorder %s24, 1
      %p57 = por %p55, %p56
      %p58 = scmp.ne.s32.totalorder %s50, %s53
      %p59 = scmp.eq.s32.totalorder %s24, 0
      %p60 = por %p58, %p59
      %p61 = scmp.ne.s32.totalorder %s50, %s53
      %p62 = scmp.eq.s32.totalorder %s29, 1
      %p63 = por %p61, %p62
      %p64 = scmp.ne.s32.totalorder %s53, %s54
      %p65 = scmp.eq.s32.totalorder %s29, 0
      %p66 = por %p64, %p65
      %p67 = scmp.ne.s32.totalorder %s53, %s54
      %p68 = scmp.eq.s32.totalorder %s30, 1
      %p69 = por %p67, %p68
      %p71 = scmp.ne.s32.totalorder %s54, %s70
      %p72 = scmp.eq.s32.totalorder %s30, 0
      %p73 = por %p71, %p72
      %s74 = ssub.s32 %s31, %s43
      %p75 = scmp.eq.s32.totalorder %s74, 0
      %s77 = sadd.s32 %s76, 1
      %s78 = scalar_select %p75, %s76, %s77
      %p81 = pneg %p75
      %p82 = scmp.eq.s32.totalorder %s24, 1
      %p83 = por %p81, %p82
      %p84 = scmp.ne.s32.totalorder %s76, %s79
      %p85 = scmp.eq.s32.totalorder %s24, 0
      %p86 = por %p84, %p85
      %p87 = scmp.ne.s32.totalorder %s76, %s79
      %p88 = scmp.eq.s32.totalorder %s29, 1
      %p89 = por %p87, %p88
      %p90 = scmp.ne.s32.totalorder %s79, %s80
      %p91 = scmp.eq.s32.totalorder %s29, 0
      %p92 = por %p90, %p91
      %p93 = scmp.ne.s32.totalorder %s79, %s80
      %p94 = scmp.eq.s32.totalorder %s30, 1
      %p95 = por %p93, %p94
      %p97 = scmp.ne.s32.totalorder %s80, %s96
      %p98 = scmp.eq.s32.totalorder %s30, 0
      %p99 = por %p97, %p98
      %s100 = ssub.s32 %s31, %s43
      %p101 = scmp.eq.s32.totalorder %s100, 0
      %s103 = sadd.s32 %s102, 1
      %s104 = scalar_select %p101, %s102, %s103
      %p107 = pneg %p101
      %p108 = scmp.eq.s32.totalorder %s24, 1
      %p109 = por %p107, %p108
      %p110 = scmp.ne.s32.totalorder %s102, %s105
      %p111 = scmp.eq.s32.totalorder %s24, 0
      %p112 = por %p110, %p111
      %p113 = scmp.ne.s32.totalorder %s102, %s105
      %p114 = scmp.eq.s32.totalorder %s29, 1
      %p115 = por %p113, %p114
      %p116 = scmp.ne.s32.totalorder %s105, %s106
      %p117 = scmp.eq.s32.totalorder %s29, 0
      %p118 = por %p116, %p117
      %p119 = scmp.ne.s32.totalorder %s105, %s106
      %p120 = scmp.eq.s32.totalorder %s30, 1
      %p121 = por %p119, %p120
      %p123 = scmp.ne.s32.totalorder %s106, %s122
      %p124 = scmp.eq.s32.totalorder %s30, 0
      %p125 = por %p123, %p124
      %s126 = sld [smem:[#allocation7 + %s32]]
      %s127 = sld [smem:[#allocation7 + %s39]]
      %s128 = ssub.s32 %s31, %s43
      %s129 = ssub.s32 %s126, %s127
      %s130 = sor.u32 %s128, %s129
      %p131 = scmp.eq.s32.totalorder %s130, 0
      %s133 = sadd.s32 %s132, 1
      %s134 = scalar_select %p131, %s132, %s133
      %p137 = pneg %p131
      %p138 = scmp.eq.s32.totalorder %s24, 1
      %p139 = por %p137, %p138
      %p140 = scmp.ne.s32.totalorder %s132, %s135
      %p141 = scmp.eq.s32.totalorder %s24, 0
      %p142 = por %p140, %p141
      %p143 = scmp.ne.s32.totalorder %s132, %s135
      %p144 = scmp.eq.s32.totalorder %s29, 1
      %p145 = por %p143, %p144
      %p146 = scmp.ne.s32.totalorder %s135, %s136
      %p147 = scmp.eq.s32.totalorder %s29, 0
      %p148 = por %p146, %p147
      %p149 = scmp.ne.s32.totalorder %s135, %s136
      %p150 = scmp.eq.s32.totalorder %s30, 1
      %p151 = por %p149, %p150
      %p153 = scmp.ne.s32.totalorder %s136, %s152
      %p154 = scmp.eq.s32.totalorder %s30, 0
      %p155 = por %p153, %p154
      %p156 = scmp.le.s32.totalorder 1, %s24
      %p157 = scmp.lt.s32.totalorder %s24, 3
      %p158 = pnand %p156, %p157
      %p159 = pneg %p158
      // Predicated region
      $region9: #{tpu_custom_call.1} parent=5 // pred_check
        _
      $region10: #{tpu_custom_call.1} parent=5 // pred_check_branch
        %161 = sbr.rel (%p158) target = $region12
      $region11: #{tpu_custom_call.1} parent=5 // pred_region
        %s162 = ssub.s32 %s24, 1
      $region12: #{tpu_custom_call.1} parent=5 // pred_fallthru
        _
      %p163 = scmp.lt.s32.totalorder %s24, 2
      // Predicated region
      $region13: #{tpu_custom_call.1} parent=5 // pred_check
        %p164 = pneg %p163
      $region14: #{tpu_custom_call.1} parent=5 // pred_check_branch
        %166 = sbr.rel (%p164) target = $region16
      $region15: #{tpu_custom_call.1} parent=5 // pred_region
        // Predicated region
        $region17: #{tpu_custom_call.1} parent=15 // pred_check
          %p167 = pneg %p60
        $region18: #{tpu_custom_call.1} parent=15 // pred_check_branch
          %169 = sbr.rel (%p167) target = $region20
        $region19: #{tpu_custom_call.1} parent=15 // pred_region
          %s170 = sand.u32 %s50, 1
          %s171 = scalar_lea.sflag [#allocation11], %s170
          %s172 = sand.u32 %s50, 1
          %s173 = smul.addr %s172, 8
          %s174 = scalar_lea.vmem [#allocation10], %s173
          %s175 = sld [smem:[#allocation7 + %s32]]
          %177 = vsyncadd %s171, 0
          %s178 = sadd.s32 %s175, %s31
          %s179 = smul.addr %s178, 8
          %s180 = scalar_lea.hbm %s3, %s179
          %s182 = sshll.u32 %s180, 4
          %s183 = int_to_ptr.hbm [resolvable:$true] %s182
          %s184 = sshll.u32 %s174, 4
          %s185 = int_to_ptr.vmem [resolvable:$true] %s184
          %187 = dma.hbm_to_vmem [thread:$0]  %s183, 128, %s185, %s171
        $region20: #{tpu_custom_call.1} parent=15 // pred_fallthru
          _
        // Predicated region
        $region21: #{tpu_custom_call.1} parent=15 // pred_check
          %p188 = pneg %p86
        $region22: #{tpu_custom_call.1} parent=15 // pred_check_branch
          %190 = sbr.rel (%p188) target = $region24
        $region23: #{tpu_custom_call.1} parent=15 // pred_region
          %s191 = sand.u32 %s24, 1
          %s192 = scalar_lea.sflag [#allocation14], %s191
          %s193 = sand.u32 %s76, 1
          %s194 = smul.addr %s193, 8
          %s195 = scalar_lea.vmem [#allocation13], %s194
          %197 = vsyncadd %s192, 0
          %s198 = smul.addr %s31, 8
          %s199 = scalar_lea.hbm %s4, %s198
          %s201 = sshll.u32 %s199, 4
          %s202 = int_to_ptr.hbm [resolvable:$true] %s201
          %s203 = sshll.u32 %s195, 4
          %s204 = int_to_ptr.vmem [resolvable:$true] %s203
          %206 = dma.hbm_to_vmem [thread:$0]  %s202, 128, %s204, %s192
        $region24: #{tpu_custom_call.1} parent=15 // pred_fallthru
          _
        // Predicated region
        $region25: #{tpu_custom_call.1} parent=15 // pred_check
          %p207 = pneg %p112
        $region26: #{tpu_custom_call.1} parent=15 // pred_check_branch
          %209 = sbr.rel (%p207) target = $region28
        $region27: #{tpu_custom_call.1} parent=15 // pred_region
          %s210 = sand.u32 %s24, 1
          %s211 = scalar_lea.sflag [#allocation14], %s210
          %s212 = sand.u32 %s102, 1
          %s213 = smul.addr %s212, 8
          %s214 = scalar_lea.vmem [#allocation15], %s213
          %216 = vsyncadd %s211, 0
          %s217 = smul.addr %s31, 8
          %s218 = scalar_lea.hbm %s5, %s217
          %s220 = sshll.u32 %s218, 4
          %s221 = int_to_ptr.hbm [resolvable:$true] %s220
          %s222 = sshll.u32 %s214, 4
          %s223 = int_to_ptr.vmem [resolvable:$true] %s222
          %225 = dma.hbm_to_vmem [thread:$0]  %s221, 128, %s223, %s211
        $region28: #{tpu_custom_call.1} parent=15 // pred_fallthru
          _
      $region16: #{tpu_custom_call.1} parent=5 // pred_fallthru
        _
      %p226 = scmp.le.s32.totalorder 1, %s24
      %p227 = scmp.lt.s32.totalorder %s24, 3
      %p228 = pnand %p226, %p227
      %p229 = pneg %p228
      // Predicated region
      $region29: #{tpu_custom_call.1} parent=5 // pred_check
        _
      $region30: #{tpu_custom_call.1} parent=5 // pred_check_branch
        %231 = sbr.rel (%p228) target = $region32
      $region31: #{tpu_custom_call.1} parent=5 // pred_region
        %s232 = ssub.s32 %s24, 1
        %s233 = sand.u32 %s53, 1
        %s234 = scalar_lea.sflag [#allocation11], %s233
        %s235 = sand.u32 %s53, 1
        %s236 = smul.addr %s235, 8
        %s237 = scalar_lea.vmem [#allocation10], %s236
        // Predicated region
        $region33: #{tpu_custom_call.1} parent=31 // pred_check
          %p238 = pneg %p66
        $region34: #{tpu_custom_call.1} parent=31 // pred_check_branch
          %240 = sbr.rel (%p238) target = $region36
        $region35: #{tpu_custom_call.1} parent=31 // pred_region
          %242 = dma.done %s234, 128
        $region36: #{tpu_custom_call.1} parent=31 // pred_fallthru
          _
        %s243 = sand.u32 %s29, 1
        %s244 = scalar_lea.sflag [#allocation14], %s243
        %s245 = sand.u32 %s79, 1
        %s246 = smul.addr %s245, 8
        %s247 = scalar_lea.vmem [#allocation13], %s246
        // Predicated region
        $region37: #{tpu_custom_call.1} parent=31 // pred_check
          %p248 = pneg %p92
        $region38: #{tpu_custom_call.1} parent=31 // pred_check_branch
          %250 = sbr.rel (%p248) target = $region40
        $region39: #{tpu_custom_call.1} parent=31 // pred_region
          %252 = dma.done %s244, 128
        $region40: #{tpu_custom_call.1} parent=31 // pred_fallthru
          _
        %s253 = sand.u32 %s29, 1
        %s254 = scalar_lea.sflag [#allocation14], %s253
        %s255 = sand.u32 %s105, 1
        %s256 = smul.addr %s255, 8
        %s257 = scalar_lea.vmem [#allocation15], %s256
        // Predicated region
        $region41: #{tpu_custom_call.1} parent=31 // pred_check
          %p258 = pneg %p118
        $region42: #{tpu_custom_call.1} parent=31 // pred_check_branch
          %260 = sbr.rel (%p258) target = $region44
        $region43: #{tpu_custom_call.1} parent=31 // pred_region
          %262 = dma.done %s254, 128
        $region44: #{tpu_custom_call.1} parent=31 // pred_fallthru
          _
        %s263 = sand.u32 %s53, 1
        %s264 = scalar_lea.sflag [#allocation11], %s263
        %s265 = sand.u32 %s53, 1
        %s266 = smul.addr %s265, 8
        %s267 = scalar_lea.vmem [#allocation10], %s266
        %p268 = pneg %p66
        %p269 = pneg %p63
        %s270 = sand.u32 %s29, 1
        %s271 = scalar_lea.sflag [#allocation14], %s270
        %s272 = sand.u32 %s79, 1
        %s273 = smul.addr %s272, 8
        %s274 = scalar_lea.vmem [#allocation13], %s273
        %p275 = pneg %p92
        %p276 = pneg %p89
        %s277 = sand.u32 %s29, 1
        %s278 = scalar_lea.sflag [#allocation14], %s277
        %s279 = sand.u32 %s105, 1
        %s280 = smul.addr %s279, 8
        %s281 = scalar_lea.vmem [#allocation15], %s280
        %p282 = pneg %p118
        %p283 = pneg %p115
        %p284 = pneg %p148
        %p285 = pneg %p145
        %s286 = sand.u32 %s135, 1
        %s287 = scalar_lea.sflag [#allocation12], %s286
        %s288 = sand.u32 %s135, 1
        %s289 = smul.addr %s288, 8
        %s290 = scalar_lea.vmem [#allocation16], %s289
        %s291 = sld [smem:[#allocation7 + %s34]]
        %s292 = sld [smem:[#allocation7 + %s34]]
        %s293 = sld [smem:[#allocation7 + %s34]]
        %s294 = sld [smem:[#allocation8 + %s34]]
        %s295 = sld [smem:[#allocation9 + %s34]]
        %s296 = smul.u32 %s293, 8
        %s297 = smul.u32 %s294, 8
        %p298 = scmp.eq.s32.totalorder %s294, 0
        // Predicated region
        $region45: #{tpu_custom_call.1} parent=31 // pred_check
          %p299 = pneg %p298
        $region46: #{tpu_custom_call.1} parent=31 // pred_check_branch
          %301 = sbr.rel (%p299) target = $region48
        $region47: #{tpu_custom_call.1} parent=31 // pred_region
          %vm302 = vcmask 7168
          %303 = vst.msk [vmem:[#allocation2] sm:$0xff] %vm302, -inf
          %304 = vst.msk [vmem:[#allocation3] sm:$0xff] %vm302, 0.0
          %vm305 = vcmask 261120
          %306 = vst.msk [vmem:[#allocation4] sm:$0xff] %vm305, 0.0
          %v307 = vld [vmem:[%s237] sm:$0xff]
          %v308 = vmul.f32 %v307, 0.35355338
          %309 = vst.msk [vmem:[#allocation5] sm:$0xff] %vm305, %v308
        $region48: #{tpu_custom_call.1} parent=31 // pred_fallthru
          _
        %s310 = scalar_lea.vmem %s247, %s297 [#allocation13]
        %v311 = vld [vmem:[%s310] sm:$0xff]
        %s312 = scalar_lea.vmem %s257, %s297 [#allocation15]
        %v313 = vld [vmem:[%s312] sm:$0xff]
        %v314 = vld [vmem:[#allocation5] sm:$0xff]
        %vm315 = vcmask 261120
        %v317 = vsel %vm315, %v314, 0
        %v320 = vsel %vm315, %v311, 0
        %322 = vmatpush.xpose.msra.mxu0 0.0
        %323 = vmatpush.xpose.msra.mxu0 0.0
        %324 = vmatpush.xpose.msra.mxu0 0.0
        %325 = vmatpush.xpose.msra.mxu0 0.0
        %326 = vmatpush.xpose.msra.mxu0 0.0
        %327 = vmatpush.xpose.msra.mxu0 0.0
        %328 = vmatpush.xpose.msra.mxu0 0.0
        %329 = vmatpush.xpose.msra.mxu0 0.0
        %330 = vmatpush.xpose.msra.mxu0 0.0
        %331 = vmatpush.xpose.msra.mxu0 0.0
        %332 = vmatpush.xpose.msra.mxu0 0.0
        %333 = vmatpush.xpose.msra.mxu0 0.0
        %334 = vmatpush.xpose.msra.mxu0 0.0
        %335 = vmatpush.xpose.msra.mxu0 0.0
        %336 = vmatpush.xpose.msra.mxu0 0.0
        %337 = vmatpush.xpose.msra.mxu0 %v320
        %338 = vmatmul.f32.gmra.mxu0 %v317
        %v339 = vpop.f32.mrf.mxu0
        %v340 = vadd.f32 0.0, %v339
        %341 = vdwg.mxu0
        %s342 = sadd.s32 %s297, 7
        %s343 = ssub.s32 %s296, 3
        %p344 = scmp.le.s32.totalorder %s342, %s343
        // Predicated region
        $region49: #{tpu_custom_call.1} parent=31 // pred_check
          %p345 = pneg %p344
        $region50: #{tpu_custom_call.1} parent=31 // pred_check_branch
          %347 = sbr.rel (%p345) target = $region52
        $region51: #{tpu_custom_call.1} parent=31 // pred_region
          %v348 = vadd.f32 %v340, 0.4
          %v349 = vld [vmem:[#allocation2] sm:$0xff]
          %vm350 = vcmask 64512
          %v351 = vsel %vm350, %v348, -inf
          %352 = vmax.xlane.f32.xlu0 %v351
          %v353 = vpop.xlane.xlu0 %352
          %v354 = vmax.f32 %v349, %v353
          %v355 = vsub.f32 %v349, %v354
          %v356 = vmul.f32 %v355, 1.442695
          %v357 = vpow.pop %v356
          %359 = vset.pattern.permute.xlu0 0
          %360 = vperm.xlu0 %359, %v354
          %v361 = vpop.permute.xlu0 %360
          %v363 = vsub.f32 %v348, %v361
          %v364 = vmul.f32 %v363, 1.442695
          %v365 = vpow.pop %v364
          %v366 = vld [vmem:[#allocation3] sm:$0xff]
          %v367 = vmul.f32 %v357, %v366
          %v368 = vsel %vm350, %v365, 0.0
          %369 = vadd.xlane.f32.xlu0 %v368
          %v370 = vpop.xlane.xlu0 %369
          %v371 = vadd.f32 %v367, %v370
          %vm372 = vcmask 7168
          %373 = vst.msk [vmem:[#allocation3] sm:$0xff] %vm372, %v371
          %v374 = vld [vmem:[#allocation4] sm:$0xff]
          %376 = vset.pattern.permute.xlu0 0
          %377 = vperm.xlu0 %376, %v357
          %v378 = vpop.permute.xlu0 %377
          %v380 = vmul.f32 %v378, %v374
          %v382 = vsel %vm350, %v365, 0
          %384 = vmatpush.msra.mxu0 0.0
          %385 = vmatpush.msra.mxu0 0.0
          %386 = vmatpush.msra.mxu0 0.0
          %387 = vmatpush.msra.mxu0 0.0
          %388 = vmatpush.msra.mxu0 0.0
          %389 = vmatpush.msra.mxu0 0.0
          %390 = vmatpush.msra.mxu0 0.0
          %391 = vmatpush.msra.mxu0 0.0
          %392 = vmatpush.msra.mxu0 0.0
          %393 = vmatpush.msra.mxu0 0.0
          %394 = vmatpush.msra.mxu0 0.0
          %395 = vmatpush.msra.mxu0 0.0
          %396 = vmatpush.msra.mxu0 0.0
          %397 = vmatpush.msra.mxu0 0.0
          %398 = vmatpush.msra.mxu0 0.0
          %399 = vmatpush.msra.mxu0 %v313
          %400 = vmatmul.f32.gmra.mxu0 %v382
          %v401 = vpop.f32.mrf.mxu0
          %v402 = vadd.f32 0.0, %v401
          %403 = vdwg.mxu0
          %v404 = vadd.f32 %v380, %v402
          %405 = vst.msk [vmem:[#allocation4] sm:$0xff] %vm315, %v404
          %406 = vst.msk [vmem:[#allocation2] sm:$0xff] %vm372, %v354
        $region52: #{tpu_custom_call.1} parent=31 // pred_fallthru
          _
        %p407 = scmp.gt.s32.totalorder %s342, %s343
        // Predicated region
        $region53: #{tpu_custom_call.1} parent=31 // pred_check
          %p408 = pneg %p407
        $region54: #{tpu_custom_call.1} parent=31 // pred_check_branch
          %410 = sbr.rel (%p408) target = $region56
        $region55: #{tpu_custom_call.1} parent=31 // pred_region
          %v411 = vlaneseq
          %v412 = vshrl.u32 %v411, 7
          %v413 = vstv %s296
          %v414 = vadd.s32 %v413, %v412
          %v415 = vlaneseq
          %v416 = vand.u32 %v415, 127
          %v417 = vstv %s297
          %v418 = vadd.s32 %v417, %v416
          %v419 = vsub.s32 %v414, %v418
          %vm420 = vcmp.lt.s32.totalorder %v419, 0
          %vm421 = vcmp.eq.s32.totalorder %v419, 0
          %vm422 = vcmp.eq.s32.totalorder %v419, 1
          %vm423 = vcmp.eq.s32.totalorder %v419, 2
          %v424 = vsel %vm423, 0.45454547, 0.4
          %v425 = vsel %vm422, 0.7692308, %v424
          %v426 = vsel %vm421, 0.0, %v425
          %v427 = vsel %vm420, -inf, %v426
          %v428 = vadd.f32 %v340, %v427
          %v429 = vld [vmem:[#allocation2] sm:$0xff]
          %vm430 = vcmask 64512
          %v431 = vsel %vm430, %v428, -inf
          %432 = vmax.xlane.f32.xlu0 %v431
          %v433 = vpop.xlane.xlu0 %432
          %v434 = vmax.f32 %v429, %v433
          %v435 = vsub.f32 %v429, %v434
          %v436 = vmul.f32 %v435, 1.442695
          %v437 = vpow.pop %v436
          %439 = vset.pattern.permute.xlu0 0
          %440 = vperm.xlu0 %439, %v434
          %v441 = vpop.permute.xlu0 %440
          %v443 = vsub.f32 %v428, %v441
          %v444 = vmul.f32 %v443, 1.442695
          %v445 = vpow.pop %v444
          %v446 = vld [vmem:[#allocation3] sm:$0xff]
          %v447 = vmul.f32 %v437, %v446
          %v448 = vsel %vm430, %v445, 0.0
          %449 = vadd.xlane.f32.xlu0 %v448
          %v450 = vpop.xlane.xlu0 %449
          %v451 = vadd.f32 %v447, %v450
          %vm452 = vcmask 7168
          %453 = vst.msk [vmem:[#allocation3] sm:$0xff] %vm452, %v451
          %v454 = vld [vmem:[#allocation4] sm:$0xff]
          %456 = vset.pattern.permute.xlu0 0
          %457 = vperm.xlu0 %456, %v437
          %v458 = vpop.permute.xlu0 %457
          %v460 = vmul.f32 %v458, %v454
          %v462 = vsel %vm430, %v445, 0
          %464 = vmatpush.msra.mxu0 0.0
          %465 = vmatpush.msra.mxu0 0.0
          %466 = vmatpush.msra.mxu0 0.0
          %467 = vmatpush.msra.mxu0 0.0
          %468 = vmatpush.msra.mxu0 0.0
          %469 = vmatpush.msra.mxu0 0.0
          %470 = vmatpush.msra.mxu0 0.0
          %471 = vmatpush.msra.mxu0 0.0
          %472 = vmatpush.msra.mxu0 0.0
          %473 = vmatpush.msra.mxu0 0.0
          %474 = vmatpush.msra.mxu0 0.0
          %475 = vmatpush.msra.mxu0 0.0
          %476 = vmatpush.msra.mxu0 0.0
          %477 = vmatpush.msra.mxu0 0.0
          %478 = vmatpush.msra.mxu0 0.0
          %479 = vmatpush.msra.mxu0 %v313
          %480 = vmatmul.f32.gmra.mxu0 %v462
          %v481 = vpop.f32.mrf.mxu0
          %v482 = vadd.f32 0.0, %v481
          %483 = vdwg.mxu0
          %v484 = vadd.f32 %v460, %v482
          %485 = vst.msk [vmem:[#allocation4] sm:$0xff] %vm315, %v484
          %486 = vst.msk [vmem:[#allocation2] sm:$0xff] %vm452, %v434
        $region56: #{tpu_custom_call.1} parent=31 // pred_fallthru
          _
        %p487 = scmp.eq.s32.totalorder %s294, %s295
        // Predicated region
        $region57: #{tpu_custom_call.1} parent=31 // pred_check
          %p488 = pneg %p487
        $region58: #{tpu_custom_call.1} parent=31 // pred_check_branch
          %490 = sbr.rel (%p488) target = $region60
        $region59: #{tpu_custom_call.1} parent=31 // pred_region
          %v491 = vld [vmem:[#allocation4] sm:$0xff]
          %v492 = vld [vmem:[#allocation3] sm:$0xff]
          %494 = vset.pattern.permute.xlu0 0
          %495 = vperm.xlu0 %494, %v492
          %v496 = vpop.permute.xlu0 %495
          %v498 = vrcp.pop %v496
          %v499 = vmul.f32 %v496, %v498
          %v500 = vsub.f32 1.0, %v499
          %v501 = vmul.f32 %v498, %v500
          %v502 = vadd.f32 %v498, %v501
          %vm503 = vweird.f32 %v496
          %vm504 = vweird.f32 %v498
          %vm505 = vmor %vm503, %vm504
          %v506 = vsel %vm505, %v498, %v502
          %v507 = vand.u32 2147483647, %v496
          %vm508 = vcmp.eq.f32.partialorder %v507, 8.507059e+37
          %v509 = vand.u32 %v496, 2147483648
          %v510 = vor.u32 1.1754944e-38, %v509
          %v511 = vsel %vm508, %v510, %v506
          %v512 = vmul.f32 %v491, %v511
          %513 = vst.msk [vmem:[%s290] sm:$0xff] %vm315, %v512
        $region60: #{tpu_custom_call.1} parent=31 // pred_fallthru
          _
        %s514 = sand.u32 %s135, 1
        %s515 = scalar_lea.sflag [#allocation12], %s514
        %s516 = sand.u32 %s135, 1
        %s517 = smul.addr %s516, 8
        %s518 = scalar_lea.vmem [#allocation16], %s517
        // Predicated region
        $region61: #{tpu_custom_call.1} parent=31 // pred_check
          %p519 = pneg %p145
        $region62: #{tpu_custom_call.1} parent=31 // pred_check_branch
          %521 = sbr.rel (%p519) target = $region64
        $region63: #{tpu_custom_call.1} parent=31 // pred_region
          %s522 = sld [smem:[#allocation7 + %s34]]
          %524 = vsyncadd %s515, 0
          %s525 = sadd.s32 %s522, %s33
          %s526 = smul.addr %s525, 8
          %s527 = scalar_lea.hbm %s6, %s526
          %s529 = sshll.u32 %s518, 4
          %s530 = int_to_ptr.vmem [resolvable:$true] %s529
          %s531 = sshll.u32 %s527, 4
          %s532 = int_to_ptr.hbm [resolvable:$true] %s531
          %534 = dma.vmem_to_hbm [thread:$0]  %s530, 128, %s532, %s515
        $region64: #{tpu_custom_call.1} parent=31 // pred_fallthru
          _
      $region32: #{tpu_custom_call.1} parent=5 // pred_fallthru
        _
      %p535 = scmp.le.s32.totalorder 2, %s24
      // Predicated region
      $region65: #{tpu_custom_call.1} parent=5 // pred_check
        %p536 = pneg %p535
      $region66: #{tpu_custom_call.1} parent=5 // pred_check_branch
        %538 = sbr.rel (%p536) target = $region68
      $region67: #{tpu_custom_call.1} parent=5 // pred_region
        %s539 = ssub.s32 %s24, 2
        // Predicated region
        $region69: #{tpu_custom_call.1} parent=67 // pred_check
          %p540 = pneg %p151
        $region70: #{tpu_custom_call.1} parent=67 // pred_check_branch
          %542 = sbr.rel (%p540) target = $region72
        $region71: #{tpu_custom_call.1} parent=67 // pred_region
          %s543 = sand.u32 %s136, 1
          %s544 = scalar_lea.sflag [#allocation12], %s543
          %s545 = sand.u32 %s136, 1
          %s546 = smul.addr %s545, 8
          %s547 = scalar_lea.vmem [#allocation16], %s546
          %549 = dma.done %s544, 128
        $region72: #{tpu_custom_call.1} parent=67 // pred_fallthru
          _
      $region68: #{tpu_custom_call.1} parent=5 // pred_fallthru
        _
    $region6: #{tpu_custom_call.1} parent=1 // loop_footer
      %s28 = sadd.s32 1, %s24
    $region7: #{tpu_custom_call.1} parent=1 // loop_footer_branch
      %23 = sbr.rel target = $region3
    $region8: #{tpu_custom_call.1} parent=1 // loop_exit
      _
    %550 = vsyncpa [#allocation11], 1
    %s551 = scalar_lea.sflag [#allocation11], 1
    %552 = vsyncpa %s551, 1
    %553 = vsyncpa [#allocation14], 1
    %s554 = scalar_lea.sflag [#allocation14], 1
    %555 = vsyncpa %s554, 1
    %556 = vsyncpa [#allocation12], 1
    %s557 = scalar_lea.sflag [#allocation12], 1
    %558 = vsyncpa %s557, 1

</llo_original>
